<compile_context>
chip_gen: v7x
topology: tpu7x:2x2x1
jax: 0.10.0
libtpu: 0.0.40
codegen_flags: <defaults>
</compile_context>

<pallas_src>
import functools

import jax
import jax.numpy as jnp
from jax.experimental import pallas as pl
from jax.experimental.pallas import tpu as pltpu


def _round_up(n, m):
    return (n + m - 1) // m * m


def mlp_kernel(x_ref, small_ref, w2_ref, o_ref):
    x = x_ref[...]                                   # [TB, 2] f32
    w1r0 = small_ref[0:1, :]                         # [1, 64]
    w1r1 = small_ref[1:2, :]                         # [1, 64]
    b1 = small_ref[2:3, :]                           # [1, 64]
    b2 = small_ref[3:4, :]                           # [1, 64]
    w3c0 = small_ref[4:5, :]                         # [1, 64]  (= W3[:, 0])
    w3c1 = small_ref[5:6, :]                         # [1, 64]  (= W3[:, 1])
    b3 = small_ref[6:7, :]                           # [1, 64], lanes >= 2 are 0

    # ---- Layer 1: Linear(2, 64) + ReLU on the VPU (two broadcast FMAs). ----
    h = x[:, 0:1] * w1r0 + x[:, 1:2] * w1r1 + b1     # [TB, 64] f32
    h = jnp.maximum(h, 0.0)

    # ---- Layer 2: Linear(64, 64) + ReLU on the MXU (bf16 in, f32 acc). ----
    h = jnp.dot(h.astype(jnp.bfloat16), w2_ref[...],
                preferred_element_type=jnp.float32) + b2
    h = jnp.maximum(h, 0.0)                          # [TB, 64] f32

    # ---- Layer 3: Linear(64, 2) as two XLU cross-lane reductions (f32). ----
    y0 = jnp.sum(h * w3c0, axis=-1, keepdims=True)   # [TB, 1]
    y1 = jnp.sum(h * w3c1, axis=-1, keepdims=True)   # [TB, 1]

    # Lane-dense store: build the full 64-lane output block (lanes >= 2 zero).
    lane = jax.lax.broadcasted_iota(jnp.int32, o_ref.shape, 1)
    y = jnp.where(lane == 0, y0, 0.0) + jnp.where(lane == 1, y1, 0.0) + b3
    o_ref[...] = y.astype(o_ref.dtype)


@functools.partial(jax.jit, static_argnames=("block_b",))
def mlp_forward(x, params, *, block_b=1024):
    small, w2 = params
    B, in_dim = x.shape
    assert in_dim == 2
    out_width = 64                                   # lane-dense output block

    # Tile: big enough to amortize the ~0.35 us per-grid-step overhead, a
    # multiple of 8, and capped so the grid has >= 2 steps whenever possible
    # (so v7x's two TensorCores both get work on the "parallel" batch axis).
    tb = min(block_b, max(8, _round_up(pl.cdiv(max(B, 1), 2), 8)))
    b_pad = _round_up(B, tb)
    if b_pad != B:
        x = jnp.pad(x, ((0, b_pad - B), (0, 0)))
    grid = (b_pad // tb,)

    flops = 2 * b_pad * (2 * 64 + 64 * 64 + 64 * 2)
    bytes_accessed = (b_pad * (in_dim + out_width) * 4
                      + small.size * 4 + w2.size * 2)

    out = pl.pallas_call(
        mlp_kernel,
        out_shape=jax.ShapeDtypeStruct((b_pad, out_width), x.dtype),
        grid=grid,
        in_specs=[
            pl.BlockSpec((tb, in_dim), lambda i: (i, 0)),   # activations (tiled)
            pl.BlockSpec((8, 64), lambda i: (0, 0)),        # small params (resident)
            pl.BlockSpec((64, 64), lambda i: (0, 0)),       # W2 (resident, bf16)
        ],
        out_specs=pl.BlockSpec((tb, out_width), lambda i: (i, 0)),
        compiler_params=pltpu.CompilerParams(
            dimension_semantics=("parallel",)),
        cost_estimate=pl.CostEstimate(
            flops=flops, transcendentals=0, bytes_accessed=bytes_accessed),
    )(x, small, w2)
    return out[:B, :2]


def init_params(key):
    """PyTorch nn.Linear-style init: U(-1/sqrt(fan_in), 1/sqrt(fan_in)).
    Weights returned as [in_features, out_features]."""
    def linear(key, fan_in, fan_out):
        kw, kb = jax.random.split(key)
        bound = 1.0 / jnp.sqrt(jnp.float32(fan_in))
        w = jax.random.uniform(kw, (fan_in, fan_out), jnp.float32, -bound, bound)
        b = jax.random.uniform(kb, (fan_out,), jnp.float32, -bound, bound)
        return w, b

    k1, k2, k3 = jax.random.split(key, 3)
    w1, b1 = linear(k1, 2, 64)    # fc1: Linear(2, 64)
    w2, b2 = linear(k2, 64, 64)   # fc2: Linear(64, 64)
    w3, b3 = linear(k3, 64, 2)    # fc3: Linear(64, 2)
    return (w1, b1, w2, b2, w3, b3)


def pack_params(w1, b1, w2, b2, w3, b3):
    """Coalesce the 6 tiny parameter arrays into 2 VMEM-friendly slabs."""
    small = jnp.zeros((8, 64), jnp.float32)
    small = small.at[0:2, :].set(w1)        # W1 rows (VPU layer 1)
    small = small.at[2, :].set(b1)
    small = small.at[3, :].set(b2)
    small = small.at[4, :].set(w3[:, 0])    # W3 columns (XLU layer 3)
    small = small.at[5, :].set(w3[:, 1])
    small = small.at[6, 0:2].set(b3)        # b3 zero-padded to 64 lanes
    return small, w2.astype(jnp.bfloat16)   # bf16 MXU operand, f32 accumulate


if __name__ == "__main__":
    key = jax.random.PRNGKey(0)
    k_params, k_x = jax.random.split(key)

    raw = init_params(k_params)
    params = pack_params(*raw)

    B = 512                                  # exercises a 2-step batch grid
    x = jax.random.normal(k_x, (B, 2), dtype=jnp.float32)

    y = mlp_forward(x, params)
    jax.block_until_ready(y)
    assert y.shape == (B, 2)

    w1, b1, w2, b2, w3, b3 = raw

    # Reference mirroring the kernel's numerics (bf16 layer-2 MXU operands,
    # f32 accumulation, f32 layer 1 and layer 3).
    h = jnp.maximum(x @ w1 + b1, 0.0)
    h = jnp.maximum(
        jnp.dot(h.astype(jnp.bfloat16), w2.astype(jnp.bfloat16),
                preferred_element_type=jnp.float32) + b2, 0.0)
    ref_mixed = h @ w3 + b3
    assert jnp.allclose(y, ref_mixed, atol=1e-2, rtol=1e-2)

    # Pure-f32 reference = the original PyTorch forward semantics.
    h32 = jnp.maximum(x @ w1 + b1, 0.0)
    h32 = jnp.maximum(h32 @ w2 + b2, 0.0)
    ref_f32 = h32 @ w3 + b3
    assert jnp.allclose(y, ref_f32, atol=5e-2, rtol=5e-2)

    print("KERNEL_OK")
</pallas_src>

<mosaic_0001>
module attributes {stable_mosaic.version = 11 : i64} {
  func.func @mlp_kernel(%arg0: i32, %arg1: memref<256x2xf32, #tpu.memory_space<vmem>>, %arg2: memref<8x64xf32, #tpu.memory_space<vmem>>, %arg3: memref<64x64xbf16, #tpu.memory_space<vmem>>, %arg4: memref<256x64xf32, #tpu.memory_space<vmem>>) attributes {dimension_semantics = [#tpu.dimension_semantics<parallel>], iteration_bounds = array<i64: 2>, scalar_prefetch = 0 : i64, scratch_operands = 0 : i64, tpu.core_type = #tpu.core_type<tc>, window_params = [{transform_indices = @transform_0, window_bounds = array<i64: 256, 2>}, {pipeline_mode = #tpu.pipeline_mode<synchronous>, transform_indices = @transform_1, window_bounds = array<i64: 8, 64>}, {pipeline_mode = #tpu.pipeline_mode<synchronous>, transform_indices = @transform_2, window_bounds = array<i64: 64, 64>}, {transform_indices = @transform_3, window_bounds = array<i64: 256, 64>}]} {
    %c0 = arith.constant 0 : index
    %c0_0 = arith.constant 0 : index
    %0 = vector.load %arg1[%c0, %c0_0] : memref<256x2xf32, #tpu.memory_space<vmem>>, vector<256x2xf32>
    %c0_1 = arith.constant 0 : index
    %c0_2 = arith.constant 0 : index
    %1 = vector.load %arg2[%c0_1, %c0_2] : memref<8x64xf32, #tpu.memory_space<vmem>>, vector<1x64xf32>
    %c1 = arith.constant 1 : index
    %c0_3 = arith.constant 0 : index
    %2 = vector.load %arg2[%c1, %c0_3] : memref<8x64xf32, #tpu.memory_space<vmem>>, vector<1x64xf32>
    %c2 = arith.constant 2 : index
    %c0_4 = arith.constant 0 : index
    %3 = vector.load %arg2[%c2, %c0_4] : memref<8x64xf32, #tpu.memory_space<vmem>>, vector<1x64xf32>
    %c3 = arith.constant 3 : index
    %c0_5 = arith.constant 0 : index
    %4 = vector.load %arg2[%c3, %c0_5] : memref<8x64xf32, #tpu.memory_space<vmem>>, vector<1x64xf32>
    %c4 = arith.constant 4 : index
    %c0_6 = arith.constant 0 : index
    %5 = vector.load %arg2[%c4, %c0_6] : memref<8x64xf32, #tpu.memory_space<vmem>>, vector<1x64xf32>
    %c5 = arith.constant 5 : index
    %c0_7 = arith.constant 0 : index
    %6 = vector.load %arg2[%c5, %c0_7] : memref<8x64xf32, #tpu.memory_space<vmem>>, vector<1x64xf32>
    %c6 = arith.constant 6 : index
    %c0_8 = arith.constant 0 : index
    %7 = vector.load %arg2[%c6, %c0_8] : memref<8x64xf32, #tpu.memory_space<vmem>>, vector<1x64xf32>
    %8 = vector.extract_strided_slice %0 {offsets = [0, 0], sizes = [256, 1], strides = [1, 1]} : vector<256x2xf32> to vector<256x1xf32>
    %9 = vector.broadcast %8 : vector<256x1xf32> to vector<256x64xf32>
    %10 = vector.broadcast %1 : vector<1x64xf32> to vector<256x64xf32>
    %11 = arith.mulf %9, %10 : vector<256x64xf32>
    %12 = vector.extract_strided_slice %0 {offsets = [0, 1], sizes = [256, 1], strides = [1, 1]} : vector<256x2xf32> to vector<256x1xf32>
    %13 = vector.broadcast %12 : vector<256x1xf32> to vector<256x64xf32>
    %14 = vector.broadcast %2 : vector<1x64xf32> to vector<256x64xf32>
    %15 = arith.mulf %13, %14 : vector<256x64xf32>
    %16 = arith.addf %11, %15 : vector<256x64xf32>
    %17 = vector.broadcast %3 : vector<1x64xf32> to vector<256x64xf32>
    %18 = arith.addf %16, %17 : vector<256x64xf32>
    %cst = arith.constant 0.000000e+00 : f32
    %19 = vector.broadcast %cst : f32 to vector<256x64xf32>
    %20 = arith.maximumf %18, %19 : vector<256x64xf32>
    %21 = arith.truncf %20 : vector<256x64xf32> to vector<256x64xbf16>
    %c0_9 = arith.constant 0 : index
    %c0_10 = arith.constant 0 : index
    %22 = vector.load %arg3[%c0_9, %c0_10] : memref<64x64xbf16, #tpu.memory_space<vmem>>, vector<64x64xbf16>
    %cst_11 = arith.constant dense<0.000000e+00> : vector<256x64xf32>
    %23 = tpu.matmul %21, %22, %cst_11 {dimension_numbers = #tpu.dot_dimension_numbers<[1], [0], [0], [1], [0, 0, 1, 1], [], []>} : vector<256x64xbf16>, vector<64x64xbf16>, vector<256x64xf32> -> vector<256x64xf32>
    %24 = vector.broadcast %4 : vector<1x64xf32> to vector<256x64xf32>
    %25 = arith.addf %23, %24 : vector<256x64xf32>
    %cst_12 = arith.constant 0.000000e+00 : f32
    %26 = vector.broadcast %cst_12 : f32 to vector<256x64xf32>
    %27 = arith.maximumf %25, %26 : vector<256x64xf32>
    %28 = vector.broadcast %5 : vector<1x64xf32> to vector<256x64xf32>
    %29 = arith.mulf %27, %28 : vector<256x64xf32>
    %cst_13 = arith.constant dense<0.000000e+00> : vector<256xf32>
    %30 = vector.multi_reduction <add>, %29, %cst_13 [1] : vector<256x64xf32> to vector<256xf32>
    %31 = vector.shape_cast %30 : vector<256xf32> to vector<256x1xf32>
    %32 = vector.broadcast %6 : vector<1x64xf32> to vector<256x64xf32>
    %33 = arith.mulf %27, %32 : vector<256x64xf32>
    %cst_14 = arith.constant dense<0.000000e+00> : vector<256xf32>
    %34 = vector.multi_reduction <add>, %33, %cst_14 [1] : vector<256x64xf32> to vector<256xf32>
    %35 = vector.shape_cast %34 : vector<256xf32> to vector<256x1xf32>
    %36 = tpu.iota {dimensions = array<i32: 1>} : vector<256x64xi32>
    %c0_i32 = arith.constant 0 : i32
    %37 = vector.broadcast %c0_i32 : i32 to vector<256x64xi32>
    %38 = arith.cmpi eq, %36, %37 : vector<256x64xi32>
    %cst_15 = arith.constant 0.000000e+00 : f32
    %39 = vector.shape_cast %31 : vector<256x1xf32> to vector<256x1xf32>
    %40 = vector.broadcast %39 : vector<256x1xf32> to vector<256x64xf32>
    %41 = vector.broadcast %cst_15 : f32 to vector<256x64xf32>
    %42 = arith.select %38, %40, %41 : vector<256x64xi1>, vector<256x64xf32>
    %c1_i32 = arith.constant 1 : i32
    %43 = vector.broadcast %c1_i32 : i32 to vector<256x64xi32>
    %44 = arith.cmpi eq, %36, %43 : vector<256x64xi32>
    %cst_16 = arith.constant 0.000000e+00 : f32
    %45 = vector.shape_cast %35 : vector<256x1xf32> to vector<256x1xf32>
    %46 = vector.broadcast %45 : vector<256x1xf32> to vector<256x64xf32>
    %47 = vector.broadcast %cst_16 : f32 to vector<256x64xf32>
    %48 = arith.select %44, %46, %47 : vector<256x64xi1>, vector<256x64xf32>
    %49 = arith.addf %42, %48 : vector<256x64xf32>
    %50 = vector.broadcast %7 : vector<1x64xf32> to vector<256x64xf32>
    %51 = arith.addf %49, %50 : vector<256x64xf32>
    %c0_17 = arith.constant 0 : index
    %c0_18 = arith.constant 0 : index
    %52 = vector.load %arg4[%c0_17, %c0_18] : memref<256x64xf32, #tpu.memory_space<vmem>>, vector<256x64xf32>
    tpu.vector_store %arg4[%c0_17, %c0_18], %51 {strides = array<i32>} : memref<256x64xf32, #tpu.memory_space<vmem>>, vector<256x64xf32>,
    return
  }
  func.func @transform_0(%arg0: i32) -> (i32, i32) {
    %c0_i32 = arith.constant 0 : i32
    %c0_i32_0 = arith.constant 0 : i32
    return %arg0, %c0_i32 : i32, i32
  }
  func.func @transform_1(%arg0: i32) -> (i32, i32) {
    %c0_i32 = arith.constant 0 : i32
    %c0_i32_0 = arith.constant 0 : i32
    %c0_i32_1 = arith.constant 0 : i32
    return %c0_i32, %c0_i32_0 : i32, i32
  }
  func.func @transform_2(%arg0: i32) -> (i32, i32) {
    %c0_i32 = arith.constant 0 : i32
    %c0_i32_0 = arith.constant 0 : i32
    %c0_i32_1 = arith.constant 0 : i32
    return %c0_i32, %c0_i32_0 : i32, i32
  }
  func.func @transform_3(%arg0: i32) -> (i32, i32) {
    %c0_i32 = arith.constant 0 : i32
    %c0_i32_0 = arith.constant 0 : i32
    return %arg0, %c0_i32 : i32, i32
  }
}

</mosaic_0001>

<llo_original>
// kernel: mlp_forward.1
$region0: #{mlp_forward.1}
  #allocation0 [shape = 'u32[]', space=smem, size = 0x4, offset = 0x4, fixed_abs, tag = 'smem constant byte address 0x4 - core index']
  #allocation1 [shape = 'u32[144,128]{1,0:T(1,128)}', space=vmem, size = 0x12000, scoped, tag = 'internal scratch']
  %s0 = inlined_call_operand.vmem [shape: f32[512,2], index: 0, kind: input, shape index: {}]
  %s1 = inlined_call_operand.vmem [shape: f32[8,64], index: 1, kind: input, shape index: {}]
  %s2 = inlined_call_operand.vmem [shape: bf16[64,64], index: 2, kind: input, shape index: {}]
  %s3 = inlined_call_operand.vmem [shape: f32[512,64], index: 3, kind: output, shape index: {}]
  %s4 = sld [smem:[#allocation0]]
  $region45: #{mlp_forward.1} parent=0
    _
  %s6 = ssub.s32 1, %s4
  %s7 = scalar_select 0, %s6, %s4
  loop: start=0, step=1, limit=4
  $region2: #{mlp_forward.1} parent=0 // loop_pre_header
    _
  $region3: #{mlp_forward.1} parent=0 // loop_header
    %s9 = sphi 0, %s13
    %p10 = scmp.ge.s32.totalorder %s9, 4
    %s19 = sphi 0, %s21
    %s22 = sphi 0, %s19
    %s23 = sphi 0, %s22
    %s39 = sphi 0, %s23
    %s43 = sphi 0, %s43
    %s45 = sphi 0, %s43
    %s46 = sphi 0, %s45
    %s60 = sphi 0, %s46
    %s64 = sphi 0, %s64
    %s66 = sphi 0, %s64
    %s67 = sphi 0, %s66
    %s81 = sphi 0, %s67
    %s87 = sphi 0, %s89
    %s90 = sphi 0, %s87
    %s91 = sphi 0, %s90
    %s107 = sphi 0, %s91
  $region4: #{mlp_forward.1} parent=0 // loop_header_branch
    %12 = sbr.rel (%p10) target = $region8
  $region5: #{mlp_forward.1} parent=0 // loop_body
    %s14 = ssub.s32 %s9, 1
    %s15 = ssub.s32 %s9, 2
    %s16 = sadd.s32 %s9, 1
    %s17 = ssub.s32 %s9, %s16
    %p18 = scmp.eq.s32.totalorder %s17, 0
    %s20 = sadd.s32 %s19, 1
    %s21 = scalar_select %p18, %s19, %s20
    %p24 = pneg %p18
    %p25 = scmp.eq.s32.totalorder %s9, 1
    %p26 = por %p24, %p25
    %p27 = scmp.ne.s32.totalorder %s19, %s22
    %p28 = scmp.eq.s32.totalorder %s9, 0
    %p29 = por %p27, %p28
    %p30 = scmp.ne.s32.totalorder %s19, %s22
    %p31 = scmp.eq.s32.totalorder %s14, 1
    %p32 = por %p30, %p31
    %p33 = scmp.ne.s32.totalorder %s22, %s23
    %p34 = scmp.eq.s32.totalorder %s14, 0
    %p35 = por %p33, %p34
    %p36 = scmp.ne.s32.totalorder %s22, %s23
    %p37 = scmp.eq.s32.totalorder %s15, 1
    %p38 = por %p36, %p37
    %p40 = scmp.ne.s32.totalorder %s23, %s39
    %p41 = scmp.eq.s32.totalorder %s15, 0
    %p42 = por %p40, %p41
    %s44 = sadd.s32 %s43, 1
    %p47 = scmp.eq.s32.totalorder %s9, 1
    %p48 = scmp.ne.s32.totalorder %s43, %s45
    %p49 = scmp.eq.s32.totalorder %s9, 0
    %p50 = por %p48, %p49
    %p51 = scmp.ne.s32.totalorder %s43, %s45
    %p52 = scmp.eq.s32.totalorder %s14, 1
    %p53 = por %p51, %p52
    %p54 = scmp.ne.s32.totalorder %s45, %s46
    %p55 = scmp.eq.s32.totalorder %s14, 0
    %p56 = por %p54, %p55
    %p57 = scmp.ne.s32.totalorder %s45, %s46
    %p58 = scmp.eq.s32.totalorder %s15, 1
    %p59 = por %p57, %p58
    %p61 = scmp.ne.s32.totalorder %s46, %s60
    %p62 = scmp.eq.s32.totalorder %s15, 0
    %p63 = por %p61, %p62
    %s65 = sadd.s32 %s64, 1
    %p68 = scmp.eq.s32.totalorder %s9, 1
    %p69 = scmp.ne.s32.totalorder %s64, %s66
    %p70 = scmp.eq.s32.totalorder %s9, 0
    %p71 = por %p69, %p70
    %p72 = scmp.ne.s32.totalorder %s64, %s66
    %p73 = scmp.eq.s32.totalorder %s14, 1
    %p74 = por %p72, %p73
    %p75 = scmp.ne.s32.totalorder %s66, %s67
    %p76 = scmp.eq.s32.totalorder %s14, 0
    %p77 = por %p75, %p76
    %p78 = scmp.ne.s32.totalorder %s66, %s67
    %p79 = scmp.eq.s32.totalorder %s15, 1
    %p80 = por %p78, %p79
    %p82 = scmp.ne.s32.totalorder %s67, %s81
    %p83 = scmp.eq.s32.totalorder %s15, 0
    %p84 = por %p82, %p83
    %s85 = ssub.s32 %s9, %s16
    %p86 = scmp.eq.s32.totalorder %s85, 0
    %s88 = sadd.s32 %s87, 1
    %s89 = scalar_select %p86, %s87, %s88
    %p92 = pneg %p86
    %p93 = scmp.eq.s32.totalorder %s9, 1
    %p94 = por %p92, %p93
    %p95 = scmp.ne.s32.totalorder %s87, %s90
    %p96 = scmp.eq.s32.totalorder %s9, 0
    %p97 = por %p95, %p96
    %p98 = scmp.ne.s32.totalorder %s87, %s90
    %p99 = scmp.eq.s32.totalorder %s14, 1
    %p100 = por %p98, %p99
    %p101 = scmp.ne.s32.totalorder %s90, %s91
    %p102 = scmp.eq.s32.totalorder %s14, 0
    %p103 = por %p101, %p102
    %p104 = scmp.ne.s32.totalorder %s90, %s91
    %p105 = scmp.eq.s32.totalorder %s15, 1
    %p106 = por %p104, %p105
    %p108 = scmp.ne.s32.totalorder %s91, %s107
    %p109 = scmp.eq.s32.totalorder %s15, 0
    %p110 = por %p108, %p109
    %p111 = scmp.le.s32.totalorder 1, %s9
    %p112 = scmp.lt.s32.totalorder %s9, 3
    %p113 = pnand %p111, %p112
    %p114 = pneg %p113
    // Predicated region
    $region9: #{mlp_forward.1} parent=5 // pred_check
      _
    $region10: #{mlp_forward.1} parent=5 // pred_check_branch
      %116 = sbr.rel (%p113) target = $region12
    $region11: #{mlp_forward.1} parent=5 // pred_region
      %s117 = ssub.s32 %s9, 1
      // Predicated region
      $region13: #{mlp_forward.1} parent=11 // pred_check
        %p118 = pneg %p56
      $region14: #{mlp_forward.1} parent=11 // pred_check_branch
        %120 = sbr.rel (%p118) target = $region16
      $region15: #{mlp_forward.1} parent=11 // pred_region
        _
      $region16: #{mlp_forward.1} parent=11 // pred_fallthru
        _
      // Predicated region
      $region17: #{mlp_forward.1} parent=11 // pred_check
        %p121 = pneg %p77
      $region18: #{mlp_forward.1} parent=11 // pred_check_branch
        %123 = sbr.rel (%p121) target = $region20
      $region19: #{mlp_forward.1} parent=11 // pred_region
        _
      $region20: #{mlp_forward.1} parent=11 // pred_fallthru
        _
    $region12: #{mlp_forward.1} parent=5 // pred_fallthru
      _
    %p124 = scmp.lt.s32.totalorder %s9, 2
    // Predicated region
    $region21: #{mlp_forward.1} parent=5 // pred_check
      %p125 = pneg %p124
    $region22: #{mlp_forward.1} parent=5 // pred_check_branch
      %127 = sbr.rel (%p125) target = $region24
    $region23: #{mlp_forward.1} parent=5 // pred_region
      // Predicated region
      $region25: #{mlp_forward.1} parent=23 // pred_check
        %p128 = pneg %p29
      $region26: #{mlp_forward.1} parent=23 // pred_check_branch
        %130 = sbr.rel (%p128) target = $region28
      $region27: #{mlp_forward.1} parent=23 // pred_region
        %s131 = smul.u32 32, %s9
        %p132 = scmp.lt.s32.totalorder %s131, 63
        %s133 = scalar_select %p132, %s131, 63
        %s134 = smul.addr %s133, 8
        %s135 = scalar_lea.vmem %s0, %s134
        %s136 = smul.u32 32, %s9
      $region28: #{mlp_forward.1} parent=23 // pred_fallthru
        _
    $region24: #{mlp_forward.1} parent=5 // pred_fallthru
      _
    %p137 = scmp.le.s32.totalorder 1, %s9
    %p138 = scmp.lt.s32.totalorder %s9, 3
    %p139 = pnand %p137, %p138
    %p140 = pneg %p139
    // Predicated region
    $region29: #{mlp_forward.1} parent=5 // pred_check
      _
    $region30: #{mlp_forward.1} parent=5 // pred_check_branch
      %142 = sbr.rel (%p139) target = $region32
    $region31: #{mlp_forward.1} parent=5 // pred_region
      %s143 = ssub.s32 %s9, 1
      %s144 = smul.u32 32, %s14
      %p145 = scmp.lt.s32.totalorder %s144, 63
      %s146 = scalar_select %p145, %s144, 63
      %s147 = smul.addr %s146, 8
      %s148 = scalar_lea.vmem %s0, %s147
      %p149 = pneg %p35
      %p150 = pneg %p32
      %p151 = pneg %p56
      %p152 = pneg %p53
      %p153 = pneg %p77
      %p154 = pneg %p74
      %p155 = pneg %p103
      %p156 = pneg %p100
      %s157 = smul.u32 32, %s14
      %p158 = scmp.lt.s32.totalorder %s157, 63
      %s159 = scalar_select %p158, %s157, 63
      %s160 = smul.addr %s159, 8
      %s161 = scalar_lea.vmem %s3, %s160
      %s162 = smul.u32 32, %s14
      %p163 = scmp.lt.s32.totalorder %s162, 63
      %s164 = scalar_select %p163, %s162, 63
      %s165 = smul.addr %s164, 8
      %s166 = scalar_lea.vmem %s0, %s165
      %s167 = smul.u32 32, %s14
      %s168 = smul.u32 32, %s14
      %p169 = scmp.lt.s32.totalorder %s168, 63
      %s170 = scalar_select %p169, %s168, 63
      %s171 = smul.addr %s170, 8
      %s172 = scalar_lea.vmem %s3, %s171
      %s173 = smul.u32 32, %s14
      %v175 = vld [vmem:[%s166] sm:$0xff]
      %v176 = vld [vmem:[%s166 + $0x8] sm:$0xff]
      %v177 = vld [vmem:[%s166 + $0x10] sm:$0xff]
      %v178 = vld [vmem:[%s166 + $0x18] sm:$0xff]
      %v179 = vld [vmem:[%s166 + $0x20] sm:$0xff]
      %v180 = vld [vmem:[%s166 + $0x28] sm:$0xff]
      %v181 = vld [vmem:[%s166 + $0x30] sm:$0xff]
      %v182 = vld [vmem:[%s166 + $0x38] sm:$0xff]
      %v183 = vld [vmem:[%s166 + $0x40] sm:$0xff]
      %v184 = vld [vmem:[%s166 + $0x48] sm:$0xff]
      %v185 = vld [vmem:[%s166 + $0x50] sm:$0xff]
      %v186 = vld [vmem:[%s166 + $0x58] sm:$0xff]
      %v187 = vld [vmem:[%s166 + $0x60] sm:$0xff]
      %v188 = vld [vmem:[%s166 + $0x68] sm:$0xff]
      %v189 = vld [vmem:[%s166 + $0x70] sm:$0xff]
      %v190 = vld [vmem:[%s166 + $0x78] sm:$0xff]
      %v191 = vld [vmem:[%s166 + $0x80] sm:$0xff]
      %v192 = vld [vmem:[%s166 + $0x88] sm:$0xff]
      %v193 = vld [vmem:[%s166 + $0x90] sm:$0xff]
      %v194 = vld [vmem:[%s166 + $0x98] sm:$0xff]
      %v195 = vld [vmem:[%s166 + $0xa0] sm:$0xff]
      %v196 = vld [vmem:[%s166 + $0xa8] sm:$0xff]
      %v197 = vld [vmem:[%s166 + $0xb0] sm:$0xff]
      %v198 = vld [vmem:[%s166 + $0xb8] sm:$0xff]
      %v199 = vld [vmem:[%s166 + $0xc0] sm:$0xff]
      %v200 = vld [vmem:[%s166 + $0xc8] sm:$0xff]
      %v201 = vld [vmem:[%s166 + $0xd0] sm:$0xff]
      %v202 = vld [vmem:[%s166 + $0xd8] sm:$0xff]
      %v203 = vld [vmem:[%s166 + $0xe0] sm:$0xff]
      %v204 = vld [vmem:[%s166 + $0xe8] sm:$0xff]
      %v205 = vld [vmem:[%s166 + $0xf0] sm:$0xff]
      %v206 = vld [vmem:[%s166 + $0xf8] sm:$0xff]
      %v207 = vld [vmem:[%s1] sm:$0x1]
      %v208 = vld [vmem:[%s1 + $0x1] sm:$0x1]
      %v209 = vld [vmem:[%s1 + $0x2] sm:$0x1]
      %v210 = vld [vmem:[%s1 + $0x3] sm:$0x1]
      %v211 = vld [vmem:[%s1 + $0x4] sm:$0x1]
      %v212 = vld [vmem:[%s1 + $0x5] sm:$0x1]
      %v213 = vld [vmem:[%s1 + $0x6] sm:$0x1]
      %215 = vset.pattern.permute.xlu0 0
      %216 = vperm.xlu0 %215, %v175
      %v217 = vpop.permute.xlu0 %216
      %220 = vset.pattern.permute.xlu0 0
      %221 = vperm.xlu0 %220, %v176
      %v222 = vpop.permute.xlu0 %221
      %225 = vset.pattern.permute.xlu0 0
      %226 = vperm.xlu0 %225, %v177
      %v227 = vpop.permute.xlu0 %226
      %230 = vset.pattern.permute.xlu0 0
      %231 = vperm.xlu0 %230, %v178
      %v232 = vpop.permute.xlu0 %231
      %235 = vset.pattern.permute.xlu0 0
      %236 = vperm.xlu0 %235, %v179
      %v237 = vpop.permute.xlu0 %236
      %240 = vset.pattern.permute.xlu0 0
      %241 = vperm.xlu0 %240, %v180
      %v242 = vpop.permute.xlu0 %241
      %245 = vset.pattern.permute.xlu0 0
      %246 = vperm.xlu0 %245, %v181
      %v247 = vpop.permute.xlu0 %246
      %250 = vset.pattern.permute.xlu0 0
      %251 = vperm.xlu0 %250, %v182
      %v252 = vpop.permute.xlu0 %251
      %255 = vset.pattern.permute.xlu0 0
      %256 = vperm.xlu0 %255, %v183
      %v257 = vpop.permute.xlu0 %256
      %260 = vset.pattern.permute.xlu0 0
      %261 = vperm.xlu0 %260, %v184
      %v262 = vpop.permute.xlu0 %261
      %265 = vset.pattern.permute.xlu0 0
      %266 = vperm.xlu0 %265, %v185
      %v267 = vpop.permute.xlu0 %266
      %270 = vset.pattern.permute.xlu0 0
      %271 = vperm.xlu0 %270, %v186
      %v272 = vpop.permute.xlu0 %271
      %275 = vset.pattern.permute.xlu0 0
      %276 = vperm.xlu0 %275, %v187
      %v277 = vpop.permute.xlu0 %276
      %280 = vset.pattern.permute.xlu0 0
      %281 = vperm.xlu0 %280, %v188
      %v282 = vpop.permute.xlu0 %281
      %285 = vset.pattern.permute.xlu0 0
      %286 = vperm.xlu0 %285, %v189
      %v287 = vpop.permute.xlu0 %286
      %290 = vset.pattern.permute.xlu0 0
      %291 = vperm.xlu0 %290, %v190
      %v292 = vpop.permute.xlu0 %291
      %295 = vset.pattern.permute.xlu0 0
      %296 = vperm.xlu0 %295, %v191
      %v297 = vpop.permute.xlu0 %296
      %300 = vset.pattern.permute.xlu0 0
      %301 = vperm.xlu0 %300, %v192
      %v302 = vpop.permute.xlu0 %301
      %305 = vset.pattern.permute.xlu0 0
      %306 = vperm.xlu0 %305, %v193
      %v307 = vpop.permute.xlu0 %306
      %310 = vset.pattern.permute.xlu0 0
      %311 = vperm.xlu0 %310, %v194
      %v312 = vpop.permute.xlu0 %311
      %315 = vset.pattern.permute.xlu0 0
      %316 = vperm.xlu0 %315, %v195
      %v317 = vpop.permute.xlu0 %316
      %320 = vset.pattern.permute.xlu0 0
      %321 = vperm.xlu0 %320, %v196
      %v322 = vpop.permute.xlu0 %321
      %325 = vset.pattern.permute.xlu0 0
      %326 = vperm.xlu0 %325, %v197
      %v327 = vpop.permute.xlu0 %326
      %330 = vset.pattern.permute.xlu0 0
      %331 = vperm.xlu0 %330, %v198
      %v332 = vpop.permute.xlu0 %331
      %335 = vset.pattern.permute.xlu0 0
      %336 = vperm.xlu0 %335, %v199
      %v337 = vpop.permute.xlu0 %336
      %340 = vset.pattern.permute.xlu0 0
      %341 = vperm.xlu0 %340, %v200
      %v342 = vpop.permute.xlu0 %341
      %345 = vset.pattern.permute.xlu0 0
      %346 = vperm.xlu0 %345, %v201
      %v347 = vpop.permute.xlu0 %346
      %350 = vset.pattern.permute.xlu0 0
      %351 = vperm.xlu0 %350, %v202
      %v352 = vpop.permute.xlu0 %351
      %355 = vset.pattern.permute.xlu0 0
      %356 = vperm.xlu0 %355, %v203
      %v357 = vpop.permute.xlu0 %356
      %360 = vset.pattern.permute.xlu0 0
      %361 = vperm.xlu0 %360, %v204
      %v362 = vpop.permute.xlu0 %361
      %365 = vset.pattern.permute.xlu0 0
      %366 = vperm.xlu0 %365, %v205
      %v367 = vpop.permute.xlu0 %366
      %370 = vset.pattern.permute.xlu0 0
      %371 = vperm.xlu0 %370, %v206
      %v372 = vpop.permute.xlu0 %371
      %v374 = vlaneseq
      %v375 = vshrl.u32 %v374, 7
      %v376 = vsub.s32 0, %v375
      %v377 = vrot.slane %v207, %v376
      %v378 = vmul.f32 %v217, %v377
      %v379 = vmul.f32 %v222, %v377
      %v380 = vmul.f32 %v227, %v377
      %v381 = vmul.f32 %v232, %v377
      %v382 = vmul.f32 %v237, %v377
      %v383 = vmul.f32 %v242, %v377
      %v384 = vmul.f32 %v247, %v377
      %v385 = vmul.f32 %v252, %v377
      %v386 = vmul.f32 %v257, %v377
      %v387 = vmul.f32 %v262, %v377
      %v388 = vmul.f32 %v267, %v377
      %v389 = vmul.f32 %v272, %v377
      %v390 = vmul.f32 %v277, %v377
      %v391 = vmul.f32 %v282, %v377
      %v392 = vmul.f32 %v287, %v377
      %v393 = vmul.f32 %v292, %v377
      %v394 = vmul.f32 %v297, %v377
      %v395 = vmul.f32 %v302, %v377
      %v396 = vmul.f32 %v307, %v377
      %v397 = vmul.f32 %v312, %v377
      %v398 = vmul.f32 %v317, %v377
      %v399 = vmul.f32 %v322, %v377
      %v400 = vmul.f32 %v327, %v377
      %v401 = vmul.f32 %v332, %v377
      %v402 = vmul.f32 %v337, %v377
      %v403 = vmul.f32 %v342, %v377
      %v404 = vmul.f32 %v347, %v377
      %v405 = vmul.f32 %v352, %v377
      %v406 = vmul.f32 %v357, %v377
      %v407 = vmul.f32 %v362, %v377
      %v408 = vmul.f32 %v367, %v377
      %v409 = vmul.f32 %v372, %v377
      %410 = vset.pattern.permute.xlu0 1
      %411 = vperm.xlu0 %410, %v175
      %v412 = vpop.permute.xlu0 %411
      %414 = vset.pattern.permute.xlu0 1
      %415 = vperm.xlu0 %414, %v176
      %v416 = vpop.permute.xlu0 %415
      %418 = vset.pattern.permute.xlu0 1
      %419 = vperm.xlu0 %418, %v177
      %v420 = vpop.permute.xlu0 %419
      %422 = vset.pattern.permute.xlu0 1
      %423 = vperm.xlu0 %422, %v178
      %v424 = vpop.permute.xlu0 %423
      %426 = vset.pattern.permute.xlu0 1
      %427 = vperm.xlu0 %426, %v179
      %v428 = vpop.permute.xlu0 %427
      %430 = vset.pattern.permute.xlu0 1
      %431 = vperm.xlu0 %430, %v180
      %v432 = vpop.permute.xlu0 %431
      %434 = vset.pattern.permute.xlu0 1
      %435 = vperm.xlu0 %434, %v181
      %v436 = vpop.permute.xlu0 %435
      %438 = vset.pattern.permute.xlu0 1
      %439 = vperm.xlu0 %438, %v182
      %v440 = vpop.permute.xlu0 %439
      %442 = vset.pattern.permute.xlu0 1
      %443 = vperm.xlu0 %442, %v183
      %v444 = vpop.permute.xlu0 %443
      %446 = vset.pattern.permute.xlu0 1
      %447 = vperm.xlu0 %446, %v184
      %v448 = vpop.permute.xlu0 %447
      %450 = vset.pattern.permute.xlu0 1
      %451 = vperm.xlu0 %450, %v185
      %v452 = vpop.permute.xlu0 %451
      %454 = vset.pattern.permute.xlu0 1
      %455 = vperm.xlu0 %454, %v186
      %v456 = vpop.permute.xlu0 %455
      %458 = vset.pattern.permute.xlu0 1
      %459 = vperm.xlu0 %458, %v187
      %v460 = vpop.permute.xlu0 %459
      %462 = vset.pattern.permute.xlu0 1
      %463 = vperm.xlu0 %462, %v188
      %v464 = vpop.permute.xlu0 %463
      %466 = vset.pattern.permute.xlu0 1
      %467 = vperm.xlu0 %466, %v189
      %v468 = vpop.permute.xlu0 %467
      %470 = vset.pattern.permute.xlu0 1
      %471 = vperm.xlu0 %470, %v190
      %v472 = vpop.permute.xlu0 %471
      %474 = vset.pattern.permute.xlu0 1
      %475 = vperm.xlu0 %474, %v191
      %v476 = vpop.permute.xlu0 %475
      %478 = vset.pattern.permute.xlu0 1
      %479 = vperm.xlu0 %478, %v192
      %v480 = vpop.permute.xlu0 %479
      %482 = vset.pattern.permute.xlu0 1
      %483 = vperm.xlu0 %482, %v193
      %v484 = vpop.permute.xlu0 %483
      %486 = vset.pattern.permute.xlu0 1
      %487 = vperm.xlu0 %486, %v194
      %v488 = vpop.permute.xlu0 %487
      %490 = vset.pattern.permute.xlu0 1
      %491 = vperm.xlu0 %490, %v195
      %v492 = vpop.permute.xlu0 %491
      %494 = vset.pattern.permute.xlu0 1
      %495 = vperm.xlu0 %494, %v196
      %v496 = vpop.permute.xlu0 %495
      %498 = vset.pattern.permute.xlu0 1
      %499 = vperm.xlu0 %498, %v197
      %v500 = vpop.permute.xlu0 %499
      %502 = vset.pattern.permute.xlu0 1
      %503 = vperm.xlu0 %502, %v198
      %v504 = vpop.permute.xlu0 %503
      %506 = vset.pattern.permute.xlu0 1
      %507 = vperm.xlu0 %506, %v199
      %v508 = vpop.permute.xlu0 %507
      %510 = vset.pattern.permute.xlu0 1
      %511 = vperm.xlu0 %510, %v200
      %v512 = vpop.permute.xlu0 %511
      %514 = vset.pattern.permute.xlu0 1
      %515 = vperm.xlu0 %514, %v201
      %v516 = vpop.permute.xlu0 %515
      %518 = vset.pattern.permute.xlu0 1
      %519 = vperm.xlu0 %518, %v202
      %v520 = vpop.permute.xlu0 %519
      %522 = vset.pattern.permute.xlu0 1
      %523 = vperm.xlu0 %522, %v203
      %v524 = vpop.permute.xlu0 %523
      %526 = vset.pattern.permute.xlu0 1
      %527 = vperm.xlu0 %526, %v204
      %v528 = vpop.permute.xlu0 %527
      %530 = vset.pattern.permute.xlu0 1
      %531 = vperm.xlu0 %530, %v205
      %v532 = vpop.permute.xlu0 %531
      %534 = vset.pattern.permute.xlu0 1
      %535 = vperm.xlu0 %534, %v206
      %v536 = vpop.permute.xlu0 %535
      %v538 = vlaneseq
      %v539 = vshrl.u32 %v538, 7
      %v540 = vsub.s32 0, %v539
      %v541 = vrot.slane %v208, %v540
      %v542 = vmul.f32 %v412, %v541
      %v543 = vmul.f32 %v416, %v541
      %v544 = vmul.f32 %v420, %v541
      %v545 = vmul.f32 %v424, %v541
      %v546 = vmul.f32 %v428, %v541
      %v547 = vmul.f32 %v432, %v541
      %v548 = vmul.f32 %v436, %v541
      %v549 = vmul.f32 %v440, %v541
      %v550 = vmul.f32 %v444, %v541
      %v551 = vmul.f32 %v448, %v541
      %v552 = vmul.f32 %v452, %v541
      %v553 = vmul.f32 %v456, %v541
      %v554 = vmul.f32 %v460, %v541
      %v555 = vmul.f32 %v464, %v541
      %v556 = vmul.f32 %v468, %v541
      %v557 = vmul.f32 %v472, %v541
      %v558 = vmul.f32 %v476, %v541
      %v559 = vmul.f32 %v480, %v541
      %v560 = vmul.f32 %v484, %v541
      %v561 = vmul.f32 %v488, %v541
      %v562 = vmul.f32 %v492, %v541
      %v563 = vmul.f32 %v496, %v541
      %v564 = vmul.f32 %v500, %v541
      %v565 = vmul.f32 %v504, %v541
      %v566 = vmul.f32 %v508, %v541
      %v567 = vmul.f32 %v512, %v541
      %v568 = vmul.f32 %v516, %v541
      %v569 = vmul.f32 %v520, %v541
      %v570 = vmul.f32 %v524, %v541
      %v571 = vmul.f32 %v528, %v541
      %v572 = vmul.f32 %v532, %v541
      %v573 = vmul.f32 %v536, %v541
      %v574 = vadd.f32 %v378, %v542
      %v575 = vadd.f32 %v379, %v543
      %v576 = vadd.f32 %v380, %v544
      %v577 = vadd.f32 %v381, %v545
      %v578 = vadd.f32 %v382, %v546
      %v579 = vadd.f32 %v383, %v547
      %v580 = vadd.f32 %v384, %v548
      %v581 = vadd.f32 %v385, %v549
      %v582 = vadd.f32 %v386, %v550
      %v583 = vadd.f32 %v387, %v551
      %v584 = vadd.f32 %v388, %v552
      %v585 = vadd.f32 %v389, %v553
      %v586 = vadd.f32 %v390, %v554
      %v587 = vadd.f32 %v391, %v555
      %v588 = vadd.f32 %v392, %v556
      %v589 = vadd.f32 %v393, %v557
      %v590 = vadd.f32 %v394, %v558
      %v591 = vadd.f32 %v395, %v559
      %v592 = vadd.f32 %v396, %v560
      %v593 = vadd.f32 %v397, %v561
      %v594 = vadd.f32 %v398, %v562
      %v595 = vadd.f32 %v399, %v563
      %v596 = vadd.f32 %v400, %v564
      %v597 = vadd.f32 %v401, %v565
      %v598 = vadd.f32 %v402, %v566
      %v599 = vadd.f32 %v403, %v567
      %v600 = vadd.f32 %v404, %v568
      %v601 = vadd.f32 %v405, %v569
      %v602 = vadd.f32 %v406, %v570
      %v603 = vadd.f32 %v407, %v571
      %v604 = vadd.f32 %v408, %v572
      %v605 = vadd.f32 %v409, %v573
      %v606 = vlaneseq
      %v607 = vshrl.u32 %v606, 7
      %v608 = vsub.s32 0, %v607
      %v609 = vrot.slane %v209, %v608
      %v610 = vadd.f32 %v574, %v609
      %v611 = vadd.f32 %v575, %v609
      %v612 = vadd.f32 %v576, %v609
      %v613 = vadd.f32 %v577, %v609
      %v614 = vadd.f32 %v578, %v609
      %v615 = vadd.f32 %v579, %v609
      %v616 = vadd.f32 %v580, %v609
      %v617 = vadd.f32 %v581, %v609
      %v618 = vadd.f32 %v582, %v609
      %v619 = vadd.f32 %v583, %v609
      %v620 = vadd.f32 %v584, %v609
      %v621 = vadd.f32 %v585, %v609
      %v622 = vadd.f32 %v586, %v609
      %v623 = vadd.f32 %v587, %v609
      %v624 = vadd.f32 %v588, %v609
      %v625 = vadd.f32 %v589, %v609
      %v626 = vadd.f32 %v590, %v609
      %v627 = vadd.f32 %v591, %v609
      %v628 = vadd.f32 %v592, %v609
      %v629 = vadd.f32 %v593, %v609
      %v630 = vadd.f32 %v594, %v609
      %v631 = vadd.f32 %v595, %v609
      %v632 = vadd.f32 %v596, %v609
      %v633 = vadd.f32 %v597, %v609
      %v634 = vadd.f32 %v598, %v609
      %v635 = vadd.f32 %v599, %v609
      %v636 = vadd.f32 %v600, %v609
      %v637 = vadd.f32 %v601, %v609
      %v638 = vadd.f32 %v602, %v609
      %v639 = vadd.f32 %v603, %v609
      %v640 = vadd.f32 %v604, %v609
      %v641 = vadd.f32 %v605, %v609
      %v642 = vmax.f32 %v610, 0.0
      %v643 = vmax.f32 %v611, 0.0
      %v644 = vmax.f32 %v612, 0.0
      %v645 = vmax.f32 %v613, 0.0
      %v646 = vmax.f32 %v614, 0.0
      %v647 = vmax.f32 %v615, 0.0
      %v648 = vmax.f32 %v616, 0.0
      %v649 = vmax.f32 %v617, 0.0
      %v650 = vmax.f32 %v618, 0.0
      %v651 = vmax.f32 %v619, 0.0
      %v652 = vmax.f32 %v620, 0.0
      %v653 = vmax.f32 %v621, 0.0
      %v654 = vmax.f32 %v622, 0.0
      %v655 = vmax.f32 %v623, 0.0
      %v656 = vmax.f32 %v624, 0.0
      %v657 = vmax.f32 %v625, 0.0
      %v658 = vmax.f32 %v626, 0.0
      %v659 = vmax.f32 %v627, 0.0
      %v660 = vmax.f32 %v628, 0.0
      %v661 = vmax.f32 %v629, 0.0
      %v662 = vmax.f32 %v630, 0.0
      %v663 = vmax.f32 %v631, 0.0
      %v664 = vmax.f32 %v632, 0.0
      %v665 = vmax.f32 %v633, 0.0
      %v666 = vmax.f32 %v634, 0.0
      %v667 = vmax.f32 %v635, 0.0
      %v668 = vmax.f32 %v636, 0.0
      %v669 = vmax.f32 %v637, 0.0
      %v670 = vmax.f32 %v638, 0.0
      %v671 = vmax.f32 %v639, 0.0
      %v672 = vmax.f32 %v640, 0.0
      %v673 = vmax.f32 %v641, 0.0
      %v674 = vpack.c.bf16 %v643, %v642
      %v675 = vpack.c.bf16 %v645, %v644
      %v676 = vpack.c.bf16 %v647, %v646
      %v677 = vpack.c.bf16 %v649, %v648
      %v678 = vpack.c.bf16 %v651, %v650
      %v679 = vpack.c.bf16 %v653, %v652
      %v680 = vpack.c.bf16 %v655, %v654
      %v681 = vpack.c.bf16 %v657, %v656
      %v682 = vpack.c.bf16 %v659, %v658
      %v683 = vpack.c.bf16 %v661, %v660
      %v684 = vpack.c.bf16 %v663, %v662
      %v685 = vpack.c.bf16 %v665, %v664
      %v686 = vpack.c.bf16 %v667, %v666
      %v687 = vpack.c.bf16 %v669, %v668
      %v688 = vpack.c.bf16 %v671, %v670
      %v689 = vpack.c.bf16 %v673, %v672
      %v690 = vld [vmem:[%s2] sm:$0xf]
      %v691 = vld [vmem:[%s2 + $0x4] sm:$0xf]
      %v692 = vld [vmem:[%s2 + $0x8] sm:$0xf]
      %v693 = vld [vmem:[%s2 + $0xc] sm:$0xf]
      %v694 = vld [vmem:[%s2 + $0x10] sm:$0xf]
      %v695 = vld [vmem:[%s2 + $0x14] sm:$0xf]
      %v696 = vld [vmem:[%s2 + $0x18] sm:$0xf]
      %v697 = vld [vmem:[%s2 + $0x1c] sm:$0xf]
      %v698 = vlaneseq
      %v699 = vshrl.u32 %v698, 7
      %v700 = vsub.s32 0, %v699
      %v701 = vrot.slane %v210, %v700
      %v710 = vunpack.c.l.b16 %v690
      %v711 = vunpack.c.l.b16 %v691
      %v712 = vunpack.c.l.b16 %v692
      %v713 = vunpack.c.l.b16 %v693
      %v714 = vunpack.c.l.b16 %v694
      %v715 = vunpack.c.l.b16 %v695
      %v716 = vunpack.c.l.b16 %v696
      %v717 = vunpack.c.l.b16 %v697
      %v718 = vpack.c.b16 %v711, %v710
      %v719 = vpack.c.b16 %v713, %v712
      %v720 = vpack.c.b16 %v715, %v714
      %v721 = vpack.c.b16 %v717, %v716
      %vm726 = vcmask 523264
      %v728 = vsel %vm726, %v674, 0
      %v731 = vsel %vm726, %v675, 0
      %v734 = vsel %vm726, %v676, 0
      %v737 = vsel %vm726, %v677, 0
      %v740 = vsel %vm726, %v678, 0
      %v743 = vsel %vm726, %v679, 0
      %v746 = vsel %vm726, %v680, 0
      %v749 = vsel %vm726, %v681, 0
      %v752 = vsel %vm726, %v682, 0
      %v755 = vsel %vm726, %v683, 0
      %v758 = vsel %vm726, %v684, 0
      %v761 = vsel %vm726, %v685, 0
      %v764 = vsel %vm726, %v686, 0
      %v767 = vsel %vm726, %v687, 0
      %v770 = vsel %vm726, %v688, 0
      %v773 = vsel %vm726, %v689, 0
      %775 = vmatprep.subr.bf16.mxu0 0
      %776 = vmatpush1.bf16.msra.mxu0 %v718
      %777 = vmatprep.subr.bf16.mxu0 0
      %778 = vmatpush1.bf16.msra.mxu0 %v719
      %779 = vmatprep.subr.bf16.mxu0 0
      %780 = vmatpush1.bf16.msra.mxu0 %v720
      %781 = vmatprep.subr.bf16.mxu0 0
      %782 = vmatpush1.bf16.msra.mxu0 %v721
      %783 = vmatprep.subr.bf16.mxu0 0
      %784 = vmatpush1.bf16.msra.mxu0 0
      %785 = vmatprep.subr.bf16.mxu0 0
      %786 = vmatpush1.bf16.msra.mxu0 0
      %787 = vmatprep.subr.bf16.mxu0 0
      %788 = vmatpush1.bf16.msra.mxu0 0
      %789 = vmatprep.subr.bf16.mxu0 0
      %790 = vmatpush1.bf16.msra.mxu0 0
      %791 = vmatprep.subr.bf16.mxu0 0
      %792 = vmatpush1.bf16.msra.mxu0 0
      %793 = vmatprep.subr.bf16.mxu0 0
      %794 = vmatpush1.bf16.msra.mxu0 0
      %795 = vmatprep.subr.bf16.mxu0 0
      %796 = vmatpush1.bf16.msra.mxu0 0
      %797 = vmatprep.subr.bf16.mxu0 0
      %798 = vmatpush1.bf16.msra.mxu0 0
      %799 = vmatprep.subr.bf16.mxu0 0
      %800 = vmatpush1.bf16.msra.mxu0 0
      %801 = vmatprep.subr.bf16.mxu0 0
      %802 = vmatpush1.bf16.msra.mxu0 0
      %803 = vmatprep.subr.bf16.mxu0 0
      %804 = vmatpush1.bf16.msra.mxu0 0
      %805 = vmatprep.subr.bf16.mxu0 0
      %806 = vmatpush1.bf16.msra.mxu0 0
      %807 = vmatprep.mubr.bf16.mxu0 0
      %808 = vmatmul.mubr.bf16.gmra.mrb[0].mxu0 %v728
      %v809 = vpop.f32.mrb[0].mxu0
      %v810 = vadd.f32 %v701, %v809
      %v811 = vpop.f32.mrb[0].mxu0
      %v812 = vpop.f32.mrb[0].mxu0
      %v813 = vadd.f32 %v701, %v812
      %v814 = vpop.f32.mrb[0].mxu0
      %815 = vmatprep.mubr.bf16.mxu0 0
      %816 = vmatmul.mubr.bf16.gmra.mrb[0].mxu0 %v731
      %v817 = vpop.f32.mrb[0].mxu0
      %v818 = vadd.f32 %v701, %v817
      %v819 = vpop.f32.mrb[0].mxu0
      %v820 = vpop.f32.mrb[0].mxu0
      %v821 = vadd.f32 %v701, %v820
      %v822 = vpop.f32.mrb[0].mxu0
      %823 = vmatprep.mubr.bf16.mxu0 0
      %824 = vmatmul.mubr.bf16.gmra.mrb[0].mxu0 %v734
      %v825 = vpop.f32.mrb[0].mxu0
      %v826 = vadd.f32 %v701, %v825
      %v827 = vpop.f32.mrb[0].mxu0
      %v828 = vpop.f32.mrb[0].mxu0
      %v829 = vadd.f32 %v701, %v828
      %v830 = vpop.f32.mrb[0].mxu0
      %831 = vmatprep.mubr.bf16.mxu0 0
      %832 = vmatmul.mubr.bf16.gmra.mrb[0].mxu0 %v737
      %v833 = vpop.f32.mrb[0].mxu0
      %v834 = vadd.f32 %v701, %v833
      %v835 = vpop.f32.mrb[0].mxu0
      %v836 = vpop.f32.mrb[0].mxu0
      %v837 = vadd.f32 %v701, %v836
      %v838 = vpop.f32.mrb[0].mxu0
      %839 = vmatprep.mubr.bf16.mxu0 0
      %840 = vmatmul.mubr.bf16.gmra.mrb[0].mxu0 %v740
      %v841 = vpop.f32.mrb[0].mxu0
      %v842 = vadd.f32 %v701, %v841
      %v843 = vpop.f32.mrb[0].mxu0
      %v844 = vpop.f32.mrb[0].mxu0
      %v845 = vadd.f32 %v701, %v844
      %v846 = vpop.f32.mrb[0].mxu0
      %847 = vmatprep.mubr.bf16.mxu0 0
      %848 = vmatmul.mubr.bf16.gmra.mrb[0].mxu0 %v743
      %v849 = vpop.f32.mrb[0].mxu0
      %v850 = vadd.f32 %v701, %v849
      %v851 = vpop.f32.mrb[0].mxu0
      %v852 = vpop.f32.mrb[0].mxu0
      %v853 = vadd.f32 %v701, %v852
      %v854 = vpop.f32.mrb[0].mxu0
      %855 = vmatprep.mubr.bf16.mxu0 0
      %856 = vmatmul.mubr.bf16.gmra.mrb[0].mxu0 %v746
      %v857 = vpop.f32.mrb[0].mxu0
      %v858 = vadd.f32 %v701, %v857
      %v859 = vpop.f32.mrb[0].mxu0
      %v860 = vpop.f32.mrb[0].mxu0
      %v861 = vadd.f32 %v701, %v860
      %v862 = vpop.f32.mrb[0].mxu0
      %863 = vmatprep.mubr.bf16.mxu0 0
      %864 = vmatmul.mubr.bf16.gmra.mrb[0].mxu0 %v749
      %v865 = vpop.f32.mrb[0].mxu0
      %v866 = vadd.f32 %v701, %v865
      %v867 = vpop.f32.mrb[0].mxu0
      %v868 = vpop.f32.mrb[0].mxu0
      %v869 = vadd.f32 %v701, %v868
      %v870 = vpop.f32.mrb[0].mxu0
      %871 = vmatprep.mubr.bf16.mxu0 0
      %872 = vmatmul.mubr.bf16.gmra.mrb[0].mxu0 %v752
      %v873 = vpop.f32.mrb[0].mxu0
      %v874 = vadd.f32 %v701, %v873
      %v875 = vpop.f32.mrb[0].mxu0
      %v876 = vpop.f32.mrb[0].mxu0
      %v877 = vadd.f32 %v701, %v876
      %v878 = vpop.f32.mrb[0].mxu0
      %879 = vmatprep.mubr.bf16.mxu0 0
      %880 = vmatmul.mubr.bf16.gmra.mrb[0].mxu0 %v755
      %v881 = vpop.f32.mrb[0].mxu0
      %v882 = vadd.f32 %v701, %v881
      %v883 = vpop.f32.mrb[0].mxu0
      %v884 = vpop.f32.mrb[0].mxu0
      %v885 = vadd.f32 %v701, %v884
      %v886 = vpop.f32.mrb[0].mxu0
      %887 = vmatprep.mubr.bf16.mxu0 0
      %888 = vmatmul.mubr.bf16.gmra.mrb[0].mxu0 %v758
      %v889 = vpop.f32.mrb[0].mxu0
      %v890 = vadd.f32 %v701, %v889
      %v891 = vpop.f32.mrb[0].mxu0
      %v892 = vpop.f32.mrb[0].mxu0
      %v893 = vadd.f32 %v701, %v892
      %v894 = vpop.f32.mrb[0].mxu0
      %895 = vmatprep.mubr.bf16.mxu0 0
      %896 = vmatmul.mubr.bf16.gmra.mrb[0].mxu0 %v761
      %v897 = vpop.f32.mrb[0].mxu0
      %v898 = vadd.f32 %v701, %v897
      %v899 = vpop.f32.mrb[0].mxu0
      %v900 = vpop.f32.mrb[0].mxu0
      %v901 = vadd.f32 %v701, %v900
      %v902 = vpop.f32.mrb[0].mxu0
      %903 = vmatprep.mubr.bf16.mxu0 0
      %904 = vmatmul.mubr.bf16.gmra.mrb[0].mxu0 %v764
      %v905 = vpop.f32.mrb[0].mxu0
      %v906 = vadd.f32 %v701, %v905
      %v907 = vpop.f32.mrb[0].mxu0
      %v908 = vpop.f32.mrb[0].mxu0
      %v909 = vadd.f32 %v701, %v908
      %v910 = vpop.f32.mrb[0].mxu0
      %911 = vmatprep.mubr.bf16.mxu0 0
      %912 = vmatmul.mubr.bf16.gmra.mrb[0].mxu0 %v767
      %v913 = vpop.f32.mrb[0].mxu0
      %v914 = vadd.f32 %v701, %v913
      %v915 = vpop.f32.mrb[0].mxu0
      %v916 = vpop.f32.mrb[0].mxu0
      %v917 = vadd.f32 %v701, %v916
      %v918 = vpop.f32.mrb[0].mxu0
      %919 = vmatprep.mubr.bf16.mxu0 0
      %920 = vmatmul.mubr.bf16.gmra.mrb[0].mxu0 %v770
      %v921 = vpop.f32.mrb[0].mxu0
      %v922 = vadd.f32 %v701, %v921
      %v923 = vpop.f32.mrb[0].mxu0
      %v924 = vpop.f32.mrb[0].mxu0
      %v925 = vadd.f32 %v701, %v924
      %v926 = vpop.f32.mrb[0].mxu0
      %927 = vmatprep.mubr.bf16.mxu0 0
      %928 = vmatmul.mubr.bf16.gmra.mrb[0].mxu0 %v773
      %v929 = vpop.f32.mrb[0].mxu0
      %v930 = vadd.f32 %v701, %v929
      %v931 = vpop.f32.mrb[0].mxu0
      %v932 = vpop.f32.mrb[0].mxu0
      %v933 = vadd.f32 %v701, %v932
      %v934 = vpop.f32.mrb[0].mxu0
      %935 = vdwg.mxu0
      %v936 = vmax.f32 %v810, 0.0
      %v937 = vmax.f32 %v813, 0.0
      %v938 = vmax.f32 %v818, 0.0
      %v939 = vmax.f32 %v821, 0.0
      %v940 = vmax.f32 %v826, 0.0
      %v941 = vmax.f32 %v829, 0.0
      %v942 = vmax.f32 %v834, 0.0
      %v943 = vmax.f32 %v837, 0.0
      %v944 = vmax.f32 %v842, 0.0
      %v945 = vmax.f32 %v845, 0.0
      %v946 = vmax.f32 %v850, 0.0
      %v947 = vmax.f32 %v853, 0.0
      %v948 = vmax.f32 %v858, 0.0
      %v949 = vmax.f32 %v861, 0.0
      %v950 = vmax.f32 %v866, 0.0
      %v951 = vmax.f32 %v869, 0.0
      %v952 = vmax.f32 %v874, 0.0
      %v953 = vmax.f32 %v877, 0.0
      %v954 = vmax.f32 %v882, 0.0
      %v955 = vmax.f32 %v885, 0.0
      %v956 = vmax.f32 %v890, 0.0
      %v957 = vmax.f32 %v893, 0.0
      %v958 = vmax.f32 %v898, 0.0
      %v959 = vmax.f32 %v901, 0.0
      %v960 = vmax.f32 %v906, 0.0
      %v961 = vmax.f32 %v909, 0.0
      %v962 = vmax.f32 %v914, 0.0
      %v963 = vmax.f32 %v917, 0.0
      %v964 = vmax.f32 %v922, 0.0
      %v965 = vmax.f32 %v925, 0.0
      %v966 = vmax.f32 %v930, 0.0
      %v967 = vmax.f32 %v933, 0.0
      %v968 = vlaneseq
      %v969 = vshrl.u32 %v968, 7
      %v970 = vsub.s32 0, %v969
      %v971 = vrot.slane %v211, %v970
      %v972 = vmul.f32 %v936, %v971
      %v973 = vmul.f32 %v937, %v971
      %v974 = vmul.f32 %v938, %v971
      %v975 = vmul.f32 %v939, %v971
      %v976 = vmul.f32 %v940, %v971
      %v977 = vmul.f32 %v941, %v971
      %v978 = vmul.f32 %v942, %v971
      %v979 = vmul.f32 %v943, %v971
      %v980 = vmul.f32 %v944, %v971
      %v981 = vmul.f32 %v945, %v971
      %v982 = vmul.f32 %v946, %v971
      %v983 = vmul.f32 %v947, %v971
      %v984 = vmul.f32 %v948, %v971
      %v985 = vmul.f32 %v949, %v971
      %v986 = vmul.f32 %v950, %v971
      %v987 = vmul.f32 %v951, %v971
      %v988 = vmul.f32 %v952, %v971
      %v989 = vmul.f32 %v953, %v971
      %v990 = vmul.f32 %v954, %v971
      %v991 = vmul.f32 %v955, %v971
      %v992 = vmul.f32 %v956, %v971
      %v993 = vmul.f32 %v957, %v971
      %v994 = vmul.f32 %v958, %v971
      %v995 = vmul.f32 %v959, %v971
      %v996 = vmul.f32 %v960, %v971
      %v997 = vmul.f32 %v961, %v971
      %v998 = vmul.f32 %v962, %v971
      %v999 = vmul.f32 %v963, %v971
      %v1000 = vmul.f32 %v964, %v971
      %v1001 = vmul.f32 %v965, %v971
      %v1002 = vmul.f32 %v966, %v971
      %v1003 = vmul.f32 %v967, %v971
      %v1004 = vsel %vm726, %v972, 0.0
      %1005 = vadd.xlane.f32.xlu0 %v1004
      %v1006 = vpop.xlane.xlu0 %1005
      %v1007 = vsel %vm726, %v973, 0.0
      %1008 = vadd.xlane.f32.xlu0 %v1007
      %v1009 = vpop.xlane.xlu0 %1008
      %v1010 = vsel %vm726, %v974, 0.0
      %1011 = vadd.xlane.f32.xlu0 %v1010
      %v1012 = vpop.xlane.xlu0 %1011
      %v1013 = vsel %vm726, %v975, 0.0
      %1014 = vadd.xlane.f32.xlu0 %v1013
      %v1015 = vpop.xlane.xlu0 %1014
      %v1016 = vsel %vm726, %v976, 0.0
      %1017 = vadd.xlane.f32.xlu0 %v1016
      %v1018 = vpop.xlane.xlu0 %1017
      %v1019 = vsel %vm726, %v977, 0.0
      %1020 = vadd.xlane.f32.xlu0 %v1019
      %v1021 = vpop.xlane.xlu0 %1020
      %v1022 = vsel %vm726, %v978, 0.0
      %1023 = vadd.xlane.f32.xlu0 %v1022
      %v1024 = vpop.xlane.xlu0 %1023
      %v1025 = vsel %vm726, %v979, 0.0
      %1026 = vadd.xlane.f32.xlu0 %v1025
      %v1027 = vpop.xlane.xlu0 %1026
      %v1028 = vsel %vm726, %v980, 0.0
      %1029 = vadd.xlane.f32.xlu0 %v1028
      %v1030 = vpop.xlane.xlu0 %1029
      %v1031 = vsel %vm726, %v981, 0.0
      %1032 = vadd.xlane.f32.xlu0 %v1031
      %v1033 = vpop.xlane.xlu0 %1032
      %v1034 = vsel %vm726, %v982, 0.0
      %1035 = vadd.xlane.f32.xlu0 %v1034
      %v1036 = vpop.xlane.xlu0 %1035
      %v1037 = vsel %vm726, %v983, 0.0
      %1038 = vadd.xlane.f32.xlu0 %v1037
      %v1039 = vpop.xlane.xlu0 %1038
      %v1040 = vsel %vm726, %v984, 0.0
      %1041 = vadd.xlane.f32.xlu0 %v1040
      %v1042 = vpop.xlane.xlu0 %1041
      %v1043 = vsel %vm726, %v985, 0.0
      %1044 = vadd.xlane.f32.xlu0 %v1043
      %v1045 = vpop.xlane.xlu0 %1044
      %v1046 = vsel %vm726, %v986, 0.0
      %1047 = vadd.xlane.f32.xlu0 %v1046
      %v1048 = vpop.xlane.xlu0 %1047
      %v1049 = vsel %vm726, %v987, 0.0
      %1050 = vadd.xlane.f32.xlu0 %v1049
      %v1051 = vpop.xlane.xlu0 %1050
      %v1052 = vsel %vm726, %v988, 0.0
      %1053 = vadd.xlane.f32.xlu0 %v1052
      %v1054 = vpop.xlane.xlu0 %1053
      %v1055 = vsel %vm726, %v989, 0.0
      %1056 = vadd.xlane.f32.xlu0 %v1055
      %v1057 = vpop.xlane.xlu0 %1056
      %v1058 = vsel %vm726, %v990, 0.0
      %1059 = vadd.xlane.f32.xlu0 %v1058
      %v1060 = vpop.xlane.xlu0 %1059
      %v1061 = vsel %vm726, %v991, 0.0
      %1062 = vadd.xlane.f32.xlu0 %v1061
      %v1063 = vpop.xlane.xlu0 %1062
      %v1064 = vsel %vm726, %v992, 0.0
      %1065 = vadd.xlane.f32.xlu0 %v1064
      %v1066 = vpop.xlane.xlu0 %1065
      %v1067 = vsel %vm726, %v993, 0.0
      %1068 = vadd.xlane.f32.xlu0 %v1067
      %v1069 = vpop.xlane.xlu0 %1068
      %v1070 = vsel %vm726, %v994, 0.0
      %1071 = vadd.xlane.f32.xlu0 %v1070
      %v1072 = vpop.xlane.xlu0 %1071
      %v1073 = vsel %vm726, %v995, 0.0
      %1074 = vadd.xlane.f32.xlu0 %v1073
      %v1075 = vpop.xlane.xlu0 %1074
      %v1076 = vsel %vm726, %v996, 0.0
      %1077 = vadd.xlane.f32.xlu0 %v1076
      %v1078 = vpop.xlane.xlu0 %1077
      %v1079 = vsel %vm726, %v997, 0.0
      %1080 = vadd.xlane.f32.xlu0 %v1079
      %v1081 = vpop.xlane.xlu0 %1080
      %v1082 = vsel %vm726, %v998, 0.0
      %1083 = vadd.xlane.f32.xlu0 %v1082
      %v1084 = vpop.xlane.xlu0 %1083
      %v1085 = vsel %vm726, %v999, 0.0
      %1086 = vadd.xlane.f32.xlu0 %v1085
      %v1087 = vpop.xlane.xlu0 %1086
      %v1088 = vsel %vm726, %v1000, 0.0
      %1089 = vadd.xlane.f32.xlu0 %v1088
      %v1090 = vpop.xlane.xlu0 %1089
      %v1091 = vsel %vm726, %v1001, 0.0
      %1092 = vadd.xlane.f32.xlu0 %v1091
      %v1093 = vpop.xlane.xlu0 %1092
      %v1094 = vsel %vm726, %v1002, 0.0
      %1095 = vadd.xlane.f32.xlu0 %v1094
      %v1096 = vpop.xlane.xlu0 %1095
      %v1097 = vsel %vm726, %v1003, 0.0
      %1098 = vadd.xlane.f32.xlu0 %v1097
      %v1099 = vpop.xlane.xlu0 %1098
      %v1100 = vlaneseq
      %v1101 = vshrl.u32 %v1100, 7
      %v1102 = vsub.s32 0, %v1101
      %v1103 = vrot.slane %v212, %v1102
      %v1104 = vmul.f32 %v936, %v1103
      %v1105 = vmul.f32 %v937, %v1103
      %v1106 = vmul.f32 %v938, %v1103
      %v1107 = vmul.f32 %v939, %v1103
      %v1108 = vmul.f32 %v940, %v1103
      %v1109 = vmul.f32 %v941, %v1103
      %v1110 = vmul.f32 %v942, %v1103
      %v1111 = vmul.f32 %v943, %v1103
      %v1112 = vmul.f32 %v944, %v1103
      %v1113 = vmul.f32 %v945, %v1103
      %v1114 = vmul.f32 %v946, %v1103
      %v1115 = vmul.f32 %v947, %v1103
      %v1116 = vmul.f32 %v948, %v1103
      %v1117 = vmul.f32 %v949, %v1103
      %v1118 = vmul.f32 %v950, %v1103
      %v1119 = vmul.f32 %v951, %v1103
      %v1120 = vmul.f32 %v952, %v1103
      %v1121 = vmul.f32 %v953, %v1103
      %v1122 = vmul.f32 %v954, %v1103
      %v1123 = vmul.f32 %v955, %v1103
      %v1124 = vmul.f32 %v956, %v1103
      %v1125 = vmul.f32 %v957, %v1103
      %v1126 = vmul.f32 %v958, %v1103
      %v1127 = vmul.f32 %v959, %v1103
      %v1128 = vmul.f32 %v960, %v1103
      %v1129 = vmul.f32 %v961, %v1103
      %v1130 = vmul.f32 %v962, %v1103
      %v1131 = vmul.f32 %v963, %v1103
      %v1132 = vmul.f32 %v964, %v1103
      %v1133 = vmul.f32 %v965, %v1103
      %v1134 = vmul.f32 %v966, %v1103
      %v1135 = vmul.f32 %v967, %v1103
      %v1136 = vsel %vm726, %v1104, 0.0
      %1137 = vadd.xlane.f32.xlu0 %v1136
      %v1138 = vpop.xlane.xlu0 %1137
      %v1139 = vsel %vm726, %v1105, 0.0
      %1140 = vadd.xlane.f32.xlu0 %v1139
      %v1141 = vpop.xlane.xlu0 %1140
      %v1142 = vsel %vm726, %v1106, 0.0
      %1143 = vadd.xlane.f32.xlu0 %v1142
      %v1144 = vpop.xlane.xlu0 %1143
      %v1145 = vsel %vm726, %v1107, 0.0
      %1146 = vadd.xlane.f32.xlu0 %v1145
      %v1147 = vpop.xlane.xlu0 %1146
      %v1148 = vsel %vm726, %v1108, 0.0
      %1149 = vadd.xlane.f32.xlu0 %v1148
      %v1150 = vpop.xlane.xlu0 %1149
      %v1151 = vsel %vm726, %v1109, 0.0
      %1152 = vadd.xlane.f32.xlu0 %v1151
      %v1153 = vpop.xlane.xlu0 %1152
      %v1154 = vsel %vm726, %v1110, 0.0
      %1155 = vadd.xlane.f32.xlu0 %v1154
      %v1156 = vpop.xlane.xlu0 %1155
      %v1157 = vsel %vm726, %v1111, 0.0
      %1158 = vadd.xlane.f32.xlu0 %v1157
      %v1159 = vpop.xlane.xlu0 %1158
      %v1160 = vsel %vm726, %v1112, 0.0
      %1161 = vadd.xlane.f32.xlu0 %v1160
      %v1162 = vpop.xlane.xlu0 %1161
      %v1163 = vsel %vm726, %v1113, 0.0
      %1164 = vadd.xlane.f32.xlu0 %v1163
      %v1165 = vpop.xlane.xlu0 %1164
      %v1166 = vsel %vm726, %v1114, 0.0
      %1167 = vadd.xlane.f32.xlu0 %v1166
      %v1168 = vpop.xlane.xlu0 %1167
      %v1169 = vsel %vm726, %v1115, 0.0
      %1170 = vadd.xlane.f32.xlu0 %v1169
      %v1171 = vpop.xlane.xlu0 %1170
      %v1172 = vsel %vm726, %v1116, 0.0
      %1173 = vadd.xlane.f32.xlu0 %v1172
      %v1174 = vpop.xlane.xlu0 %1173
      %v1175 = vsel %vm726, %v1117, 0.0
      %1176 = vadd.xlane.f32.xlu0 %v1175
      %v1177 = vpop.xlane.xlu0 %1176
      %v1178 = vsel %vm726, %v1118, 0.0
      %1179 = vadd.xlane.f32.xlu0 %v1178
      %v1180 = vpop.xlane.xlu0 %1179
      %v1181 = vsel %vm726, %v1119, 0.0
      %1182 = vadd.xlane.f32.xlu0 %v1181
      %v1183 = vpop.xlane.xlu0 %1182
      %v1184 = vsel %vm726, %v1120, 0.0
      %1185 = vadd.xlane.f32.xlu0 %v1184
      %v1186 = vpop.xlane.xlu0 %1185
      %v1187 = vsel %vm726, %v1121, 0.0
      %1188 = vadd.xlane.f32.xlu0 %v1187
      %v1189 = vpop.xlane.xlu0 %1188
      %v1190 = vsel %vm726, %v1122, 0.0
      %1191 = vadd.xlane.f32.xlu0 %v1190
      %v1192 = vpop.xlane.xlu0 %1191
      %v1193 = vsel %vm726, %v1123, 0.0
      %1194 = vadd.xlane.f32.xlu0 %v1193
      %v1195 = vpop.xlane.xlu0 %1194
      %v1196 = vsel %vm726, %v1124, 0.0
      %1197 = vadd.xlane.f32.xlu0 %v1196
      %v1198 = vpop.xlane.xlu0 %1197
      %v1199 = vsel %vm726, %v1125, 0.0
      %1200 = vadd.xlane.f32.xlu0 %v1199
      %v1201 = vpop.xlane.xlu0 %1200
      %v1202 = vsel %vm726, %v1126, 0.0
      %1203 = vadd.xlane.f32.xlu0 %v1202
      %v1204 = vpop.xlane.xlu0 %1203
      %v1205 = vsel %vm726, %v1127, 0.0
      %1206 = vadd.xlane.f32.xlu0 %v1205
      %v1207 = vpop.xlane.xlu0 %1206
      %v1208 = vsel %vm726, %v1128, 0.0
      %1209 = vadd.xlane.f32.xlu0 %v1208
      %v1210 = vpop.xlane.xlu0 %1209
      %v1211 = vsel %vm726, %v1129, 0.0
      %1212 = vadd.xlane.f32.xlu0 %v1211
      %v1213 = vpop.xlane.xlu0 %1212
      %v1214 = vsel %vm726, %v1130, 0.0
      %1215 = vadd.xlane.f32.xlu0 %v1214
      %v1216 = vpop.xlane.xlu0 %1215
      %v1217 = vsel %vm726, %v1131, 0.0
      %1218 = vadd.xlane.f32.xlu0 %v1217
      %v1219 = vpop.xlane.xlu0 %1218
      %v1220 = vsel %vm726, %v1132, 0.0
      %1221 = vadd.xlane.f32.xlu0 %v1220
      %v1222 = vpop.xlane.xlu0 %1221
      %v1223 = vsel %vm726, %v1133, 0.0
      %1224 = vadd.xlane.f32.xlu0 %v1223
      %v1225 = vpop.xlane.xlu0 %1224
      %v1226 = vsel %vm726, %v1134, 0.0
      %1227 = vadd.xlane.f32.xlu0 %v1226
      %v1228 = vpop.xlane.xlu0 %1227
      %v1229 = vsel %vm726, %v1135, 0.0
      %1230 = vadd.xlane.f32.xlu0 %v1229
      %v1231 = vpop.xlane.xlu0 %1230
      %v1232 = vlaneseq
      %v1233 = vand.u32 %v1232, 127
      %vm1234 = vcmp.eq.s32.totalorder %v1233, 0
      %v1235 = vsel %vm1234, %v1006, 0.0
      %v1236 = vsel %vm1234, %v1009, 0.0
      %v1237 = vsel %vm1234, %v1012, 0.0
      %v1238 = vsel %vm1234, %v1015, 0.0
      %v1239 = vsel %vm1234, %v1018, 0.0
      %v1240 = vsel %vm1234, %v1021, 0.0
      %v1241 = vsel %vm1234, %v1024, 0.0
      %v1242 = vsel %vm1234, %v1027, 0.0
      %v1243 = vsel %vm1234, %v1030, 0.0
      %v1244 = vsel %vm1234, %v1033, 0.0
      %v1245 = vsel %vm1234, %v1036, 0.0
      %v1246 = vsel %vm1234, %v1039, 0.0
      %v1247 = vsel %vm1234, %v1042, 0.0
      %v1248 = vsel %vm1234, %v1045, 0.0
      %v1249 = vsel %vm1234, %v1048, 0.0
      %v1250 = vsel %vm1234, %v1051, 0.0
      %v1251 = vsel %vm1234, %v1054, 0.0
      %v1252 = vsel %vm1234, %v1057, 0.0
      %v1253 = vsel %vm1234, %v1060, 0.0
      %v1254 = vsel %vm1234, %v1063, 0.0
      %v1255 = vsel %vm1234, %v1066, 0.0
      %v1256 = vsel %vm1234, %v1069, 0.0
      %v1257 = vsel %vm1234, %v1072, 0.0
      %v1258 = vsel %vm1234, %v1075, 0.0
      %v1259 = vsel %vm1234, %v1078, 0.0
      %v1260 = vsel %vm1234, %v1081, 0.0
      %v1261 = vsel %vm1234, %v1084, 0.0
      %v1262 = vsel %vm1234, %v1087, 0.0
      %v1263 = vsel %vm1234, %v1090, 0.0
      %v1264 = vsel %vm1234, %v1093, 0.0
      %v1265 = vsel %vm1234, %v1096, 0.0
      %v1266 = vsel %vm1234, %v1099, 0.0
      %vm1267 = vcmp.eq.s32.totalorder %v1233, 1
      %v1268 = vsel %vm1267, %v1138, 0.0
      %v1269 = vsel %vm1267, %v1141, 0.0
      %v1270 = vsel %vm1267, %v1144, 0.0
      %v1271 = vsel %vm1267, %v1147, 0.0
      %v1272 = vsel %vm1267, %v1150, 0.0
      %v1273 = vsel %vm1267, %v1153, 0.0
      %v1274 = vsel %vm1267, %v1156, 0.0
      %v1275 = vsel %vm1267, %v1159, 0.0
      %v1276 = vsel %vm1267, %v1162, 0.0
      %v1277 = vsel %vm1267, %v1165, 0.0
      %v1278 = vsel %vm1267, %v1168, 0.0
      %v1279 = vsel %vm1267, %v1171, 0.0
      %v1280 = vsel %vm1267, %v1174, 0.0
      %v1281 = vsel %vm1267, %v1177, 0.0
      %v1282 = vsel %vm1267, %v1180, 0.0
      %v1283 = vsel %vm1267, %v1183, 0.0
      %v1284 = vsel %vm1267, %v1186, 0.0
      %v1285 = vsel %vm1267, %v1189, 0.0
      %v1286 = vsel %vm1267, %v1192, 0.0
      %v1287 = vsel %vm1267, %v1195, 0.0
      %v1288 = vsel %vm1267, %v1198, 0.0
      %v1289 = vsel %vm1267, %v1201, 0.0
      %v1290 = vsel %vm1267, %v1204, 0.0
      %v1291 = vsel %vm1267, %v1207, 0.0
      %v1292 = vsel %vm1267, %v1210, 0.0
      %v1293 = vsel %vm1267, %v1213, 0.0
      %v1294 = vsel %vm1267, %v1216, 0.0
      %v1295 = vsel %vm1267, %v1219, 0.0
      %v1296 = vsel %vm1267, %v1222, 0.0
      %v1297 = vsel %vm1267, %v1225, 0.0
      %v1298 = vsel %vm1267, %v1228, 0.0
      %v1299 = vsel %vm1267, %v1231, 0.0
      %v1300 = vadd.f32 %v1235, %v1268
      %v1301 = vadd.f32 %v1236, %v1269
      %v1302 = vadd.f32 %v1237, %v1270
      %v1303 = vadd.f32 %v1238, %v1271
      %v1304 = vadd.f32 %v1239, %v1272
      %v1305 = vadd.f32 %v1240, %v1273
      %v1306 = vadd.f32 %v1241, %v1274
      %v1307 = vadd.f32 %v1242, %v1275
      %v1308 = vadd.f32 %v1243, %v1276
      %v1309 = vadd.f32 %v1244, %v1277
      %v1310 = vadd.f32 %v1245, %v1278
      %v1311 = vadd.f32 %v1246, %v1279
      %v1312 = vadd.f32 %v1247, %v1280
      %v1313 = vadd.f32 %v1248, %v1281
      %v1314 = vadd.f32 %v1249, %v1282
      %v1315 = vadd.f32 %v1250, %v1283
      %v1316 = vadd.f32 %v1251, %v1284
      %v1317 = vadd.f32 %v1252, %v1285
      %v1318 = vadd.f32 %v1253, %v1286
      %v1319 = vadd.f32 %v1254, %v1287
      %v1320 = vadd.f32 %v1255, %v1288
      %v1321 = vadd.f32 %v1256, %v1289
      %v1322 = vadd.f32 %v1257, %v1290
      %v1323 = vadd.f32 %v1258, %v1291
      %v1324 = vadd.f32 %v1259, %v1292
      %v1325 = vadd.f32 %v1260, %v1293
      %v1326 = vadd.f32 %v1261, %v1294
      %v1327 = vadd.f32 %v1262, %v1295
      %v1328 = vadd.f32 %v1263, %v1296
      %v1329 = vadd.f32 %v1264, %v1297
      %v1330 = vadd.f32 %v1265, %v1298
      %v1331 = vadd.f32 %v1266, %v1299
      %v1332 = vlaneseq
      %v1333 = vshrl.u32 %v1332, 7
      %v1334 = vsub.s32 0, %v1333
      %v1335 = vrot.slane %v213, %v1334
      %v1336 = vadd.f32 %v1300, %v1335
      %v1337 = vadd.f32 %v1301, %v1335
      %v1338 = vadd.f32 %v1302, %v1335
      %v1339 = vadd.f32 %v1303, %v1335
      %v1340 = vadd.f32 %v1304, %v1335
      %v1341 = vadd.f32 %v1305, %v1335
      %v1342 = vadd.f32 %v1306, %v1335
      %v1343 = vadd.f32 %v1307, %v1335
      %v1344 = vadd.f32 %v1308, %v1335
      %v1345 = vadd.f32 %v1309, %v1335
      %v1346 = vadd.f32 %v1310, %v1335
      %v1347 = vadd.f32 %v1311, %v1335
      %v1348 = vadd.f32 %v1312, %v1335
      %v1349 = vadd.f32 %v1313, %v1335
      %v1350 = vadd.f32 %v1314, %v1335
      %v1351 = vadd.f32 %v1315, %v1335
      %v1352 = vadd.f32 %v1316, %v1335
      %v1353 = vadd.f32 %v1317, %v1335
      %v1354 = vadd.f32 %v1318, %v1335
      %v1355 = vadd.f32 %v1319, %v1335
      %v1356 = vadd.f32 %v1320, %v1335
      %v1357 = vadd.f32 %v1321, %v1335
      %v1358 = vadd.f32 %v1322, %v1335
      %v1359 = vadd.f32 %v1323, %v1335
      %v1360 = vadd.f32 %v1324, %v1335
      %v1361 = vadd.f32 %v1325, %v1335
      %v1362 = vadd.f32 %v1326, %v1335
      %v1363 = vadd.f32 %v1327, %v1335
      %v1364 = vadd.f32 %v1328, %v1335
      %v1365 = vadd.f32 %v1329, %v1335
      %v1366 = vadd.f32 %v1330, %v1335
      %v1367 = vadd.f32 %v1331, %v1335
      %1368 = vst.msk [vmem:[%s172] sm:$0xff] %vm726, %v1336
      %1369 = vst.msk [vmem:[%s172 + $0x8] sm:$0xff] %vm726, %v1337
      %1370 = vst.msk [vmem:[%s172 + $0x10] sm:$0xff] %vm726, %v1338
      %1371 = vst.msk [vmem:[%s172 + $0x18] sm:$0xff] %vm726, %v1339
      %1372 = vst.msk [vmem:[%s172 + $0x20] sm:$0xff] %vm726, %v1340
      %1373 = vst.msk [vmem:[%s172 + $0x28] sm:$0xff] %vm726, %v1341
      %1374 = vst.msk [vmem:[%s172 + $0x30] sm:$0xff] %vm726, %v1342
      %1375 = vst.msk [vmem:[%s172 + $0x38] sm:$0xff] %vm726, %v1343
      %1376 = vst.msk [vmem:[%s172 + $0x40] sm:$0xff] %vm726, %v1344
      %1377 = vst.msk [vmem:[%s172 + $0x48] sm:$0xff] %vm726, %v1345
      %1378 = vst.msk [vmem:[%s172 + $0x50] sm:$0xff] %vm726, %v1346
      %1379 = vst.msk [vmem:[%s172 + $0x58] sm:$0xff] %vm726, %v1347
      %1380 = vst.msk [vmem:[%s172 + $0x60] sm:$0xff] %vm726, %v1348
      %1381 = vst.msk [vmem:[%s172 + $0x68] sm:$0xff] %vm726, %v1349
      %1382 = vst.msk [vmem:[%s172 + $0x70] sm:$0xff] %vm726, %v1350
      %1383 = vst.msk [vmem:[%s172 + $0x78] sm:$0xff] %vm726, %v1351
      %1384 = vst.msk [vmem:[%s172 + $0x80] sm:$0xff] %vm726, %v1352
      %1385 = vst.msk [vmem:[%s172 + $0x88] sm:$0xff] %vm726, %v1353
      %1386 = vst.msk [vmem:[%s172 + $0x90] sm:$0xff] %vm726, %v1354
      %1387 = vst.msk [vmem:[%s172 + $0x98] sm:$0xff] %vm726, %v1355
      %1388 = vst.msk [vmem:[%s172 + $0xa0] sm:$0xff] %vm726, %v1356
      %1389 = vst.msk [vmem:[%s172 + $0xa8] sm:$0xff] %vm726, %v1357
      %1390 = vst.msk [vmem:[%s172 + $0xb0] sm:$0xff] %vm726, %v1358
      %1391 = vst.msk [vmem:[%s172 + $0xb8] sm:$0xff] %vm726, %v1359
      %1392 = vst.msk [vmem:[%s172 + $0xc0] sm:$0xff] %vm726, %v1360
      %1393 = vst.msk [vmem:[%s172 + $0xc8] sm:$0xff] %vm726, %v1361
      %1394 = vst.msk [vmem:[%s172 + $0xd0] sm:$0xff] %vm726, %v1362
      %1395 = vst.msk [vmem:[%s172 + $0xd8] sm:$0xff] %vm726, %v1363
      %1396 = vst.msk [vmem:[%s172 + $0xe0] sm:$0xff] %vm726, %v1364
      %1397 = vst.msk [vmem:[%s172 + $0xe8] sm:$0xff] %vm726, %v1365
      %1398 = vst.msk [vmem:[%s172 + $0xf0] sm:$0xff] %vm726, %v1366
      %1399 = vst.msk [vmem:[%s172 + $0xf8] sm:$0xff] %vm726, %v1367
      %s1400 = smul.u32 32, %s14
      %p1401 = scmp.lt.s32.totalorder %s1400, 63
      %s1402 = scalar_select %p1401, %s1400, 63
      %s1403 = smul.addr %s1402, 8
      %s1404 = scalar_lea.vmem %s3, %s1403
      // Predicated region
      $region33: #{mlp_forward.1} parent=31 // pred_check
        %p1405 = pneg %p100
      $region34: #{mlp_forward.1} parent=31 // pred_check_branch
        %1407 = sbr.rel (%p1405) target = $region36
      $region35: #{mlp_forward.1} parent=31 // pred_region
        %s1408 = smul.u32 32, %s14
      $region36: #{mlp_forward.1} parent=31 // pred_fallthru
        _
    $region32: #{mlp_forward.1} parent=5 // pred_fallthru
      _
    %p1409 = scmp.le.s32.totalorder 2, %s9
    // Predicated region
    $region37: #{mlp_forward.1} parent=5 // pred_check
      %p1410 = pneg %p1409
    $region38: #{mlp_forward.1} parent=5 // pred_check_branch
      %1412 = sbr.rel (%p1410) target = $region40
    $region39: #{mlp_forward.1} parent=5 // pred_region
      %s1413 = ssub.s32 %s9, 2
      // Predicated region
      $region41: #{mlp_forward.1} parent=39 // pred_check
        %p1414 = pneg %p106
      $region42: #{mlp_forward.1} parent=39 // pred_check_branch
        %1416 = sbr.rel (%p1414) target = $region44
      $region43: #{mlp_forward.1} parent=39 // pred_region
        %s1417 = smul.u32 32, %s15
        %p1418 = scmp.lt.s32.totalorder %s1417, 63
        %s1419 = scalar_select %p1418, %s1417, 63
        %s1420 = smul.addr %s1419, 8
        %s1421 = scalar_lea.vmem %s3, %s1420
      $region44: #{mlp_forward.1} parent=39 // pred_fallthru
        _
    $region40: #{mlp_forward.1} parent=5 // pred_fallthru
      _
  $region6: #{mlp_forward.1} parent=0 // loop_footer
    %s13 = sadd.s32 1, %s9
  $region7: #{mlp_forward.1} parent=0 // loop_footer_branch
    %8 = sbr.rel target = $region3
  $region8: #{mlp_forward.1} parent=0 // loop_exit
    _

</llo_original>
